<compile_context>
chip_gen: v7x
topology: tpu7x:2x2x1
jax: 0.10.0
libtpu: 0.0.40
codegen_flags: <defaults>
</compile_context>

<pallas_src>
import jax
import jax.numpy as jnp
from jax.experimental import pallas as pl
from jax.experimental.pallas import tpu as pltpu

_D_CHUNK = 512  # lanes per in-kernel reduction chunk (bounds f32 temp footprint)


def _linear_kernel(x_ref, w_ref, b_ref, o_ref):
    tb, d = x_ref.shape
    acc = jnp.zeros((tb, 1), jnp.float32)
    # Reduce D in chunks: f32 cast + (x*w) temps are at most (tb, _D_CHUNK)
    # instead of the full (tb, D) product. Static slices -> zero runtime cost.
    for start in range(0, d, _D_CHUNK):
        size = min(_D_CHUNK, d - start)
        xs = x_ref[:, start:start + size].astype(jnp.float32)   # (tb, size)
        ws = w_ref[:, start:start + size].astype(jnp.float32)   # (1, size)
        acc = acc + jnp.sum(xs * ws, axis=-1, keepdims=True)    # (tb, 1) f32
    o_ref[...] = (acc + b_ref[0]).astype(o_ref.dtype)


def ufdecision_forward(x, weight, bias, *, tb=None):
    """x: (B, D); weight: (1, D); bias: (1,). Returns (B, 1)."""
    B, D = x.shape
    out_dtype = jnp.result_type(x.dtype, weight.dtype)
    itemsize = jnp.dtype(x.dtype).itemsize
    out_itemsize = jnp.dtype(out_dtype).itemsize
    chunk = min(D, _D_CHUNK)

    # Physical VMEM (v7x: 64 MiB, v5e/v6e: 128 MiB); fall back conservatively.
    try:
        vmem_cap = int(pltpu.get_tpu_info().vmem_capacity_bytes)
    except Exception:
        vmem_cap = 64 << 20

    # Bytes in flight per tile row: double-buffered x tile + chunked f32
    # cast/product temps + f32 acc and double-buffered out block.
    per_row = 2 * D * itemsize + 2 * chunk * 4 + 4 * 4

    if tb is None:
        # ~3/8 of physical VMEM for streaming state: 24 MiB on v7x, 48 MiB on
        # v5e/v6e. No row cap -> small-D cases get multi-MiB tiles.
        budget = max(16 << 20, (vmem_cap * 3) // 8)
        tb = budget // per_row
        tb = int(max(32, (tb // 32) * 32))
    # Never need a tile taller than the (8-rounded) batch; keep rows a
    # multiple of 8 for the (8,128) block rule.
    b_ceil8 = ((B + 7) // 8) * 8
    tb = max(8, min(int(tb), b_ceil8))
    tb = (tb // 8) * 8

    num_tiles = int(pl.cdiv(B, tb))
    # Megacore (v7x has 2 TCs): ensure >= 2 (ideally even) grid steps when
    # there is enough work to split.
    if B >= 64:
        if num_tiles < 2:
            tb = max(32, ((int(pl.cdiv(B, 2)) + 31) // 32) * 32)
            num_tiles = int(pl.cdiv(B, tb))
        if num_tiles > 1 and num_tiles % 2 == 1:
            tb2 = max(32, ((int(pl.cdiv(B, num_tiles + 1)) + 31) // 32) * 32)
            if int(pl.cdiv(B, tb2)) % 2 == 0:
                tb = tb2
                num_tiles = int(pl.cdiv(B, tb))

    # Scoped-VMEM request: actual footprint + headroom, capped well below
    # physical VMEM (<= 3/4) so compiler scratch always fits.
    footprint = (2 * tb * D * itemsize      # double-buffered x tile
                 + 2 * tb * chunk * 4       # f32 cast + product temp (one chunk)
                 + 2 * D * 4                # resident weight row (double-buffered)
                 + 4 * tb * 4)              # acc + double-buffered out block
    vmem_limit = int(min((vmem_cap * 3) // 4,
                         max(16 << 20, footprint + (4 << 20))))
    # TODO(synk): for D so large that even tb=8 overflows this budget, tile D
    # as a second "arbitrary" grid axis with an f32 accumulator scratch.

    cost = pl.CostEstimate(
        flops=2 * B * D,
        transcendentals=0,
        bytes_accessed=B * D * itemsize + D * 4 + 4 + B * out_itemsize,
    )

    w = weight.reshape(1, D).astype(jnp.float32)   # lane-dense resident row
    b = bias.reshape(1).astype(jnp.float32)        # scalar in SMEM

    out = pl.pallas_call(
        _linear_kernel,
        out_shape=jax.ShapeDtypeStruct((B, 1), out_dtype),
        grid_spec=pl.GridSpec(
            grid=(num_tiles,),
            in_specs=[
                pl.BlockSpec((tb, D), lambda i: (i, 0)),            # streamed x tiles
                pl.BlockSpec((1, D), lambda i: (0, 0)),             # constant weight block
                pl.BlockSpec(memory_space=pltpu.MemorySpace.SMEM),  # bias scalar
            ],
            out_specs=pl.BlockSpec((tb, 1), lambda i: (i, 0)),
        ),
        compiler_params=pltpu.CompilerParams(
            dimension_semantics=("parallel",),   # independent tiles -> both TCs on v7x
            vmem_limit_bytes=vmem_limit,
        ),
        cost_estimate=cost,
    )(x, w, b)
    # TODO(synk): for tiny D with huge B, a lane-dense (1, TB) output layout
    # would avoid masked vst.msk stores; negligible for typical D.
    return out


if __name__ == "__main__":
    key = jax.random.PRNGKey(0)
    kx, kw, kb = jax.random.split(key, 3)

    batch = 8
    input_dim = 32

    x = jax.random.normal(kx, (batch, input_dim), dtype=jnp.float32)

    # Deterministic params mimicking nn.Linear's uniform(-1/sqrt(D), 1/sqrt(D)).
    bound = 1.0 / jnp.sqrt(jnp.float32(input_dim))
    weight = jax.random.uniform(kw, (1, input_dim), jnp.float32, -bound, bound)
    bias = jax.random.uniform(kb, (1,), jnp.float32, -bound, bound)

    out = ufdecision_forward(x, weight, bias)
    out = jax.block_until_ready(out)

    # Reference check in plain JAX (same math as torch nn.Linear forward).
    ref = x @ weight.T + bias
    assert out.shape == (batch, 1)
    assert jnp.allclose(out, ref, atol=1e-5, rtol=1e-5)

    print("KERNEL_OK")
</pallas_src>

<mosaic_0001>
module attributes {stable_mosaic.version = 11 : i64} {
  func.func @_linear_kernel(%arg0: i32, %arg1: memref<8x32xf32, #tpu.memory_space<vmem>>, %arg2: memref<1x32xf32, #tpu.memory_space<vmem>>, %arg3: memref<1xf32, #tpu.memory_space<smem>>, %arg4: memref<8x1xf32, #tpu.memory_space<vmem>>) attributes {dimension_semantics = [#tpu.dimension_semantics<parallel>], iteration_bounds = array<i64: 1>, scalar_prefetch = 0 : i64, scratch_operands = 0 : i64, tpu.core_type = #tpu.core_type<tc>, window_params = [{transform_indices = @transform_0, window_bounds = array<i64: 8, 32>}, {pipeline_mode = #tpu.pipeline_mode<synchronous>, transform_indices = @transform_1, window_bounds = array<i64: 1, 32>}, {transform_indices = @transform_2, window_bounds = array<i64: 1>}, {transform_indices = @transform_3, window_bounds = array<i64: 8, 1>}]} {
    %cst = arith.constant 0.000000e+00 : f32
    %0 = vector.broadcast %cst : f32 to vector<8x1xf32>
    %c0 = arith.constant 0 : index
    %c0_0 = arith.constant 0 : index
    %1 = vector.load %arg1[%c0, %c0_0] : memref<8x32xf32, #tpu.memory_space<vmem>>, vector<8x32xf32>
    %c0_1 = arith.constant 0 : index
    %c0_2 = arith.constant 0 : index
    %2 = vector.load %arg2[%c0_1, %c0_2] : memref<1x32xf32, #tpu.memory_space<vmem>>, vector<1x32xf32>
    %3 = vector.broadcast %2 : vector<1x32xf32> to vector<8x32xf32>
    %4 = arith.mulf %1, %3 : vector<8x32xf32>
    %cst_3 = arith.constant dense<0.000000e+00> : vector<8xf32>
    %5 = vector.multi_reduction <add>, %4, %cst_3 [1] : vector<8x32xf32> to vector<8xf32>
    %6 = vector.shape_cast %5 : vector<8xf32> to vector<8x1xf32>
    %7 = arith.addf %0, %6 : vector<8x1xf32>
    %c0_4 = arith.constant 0 : index
    %8 = memref.load %arg3[%c0_4] : memref<1xf32, #tpu.memory_space<smem>>
    %9 = vector.broadcast %8 : f32 to vector<8x1xf32>
    %10 = arith.addf %7, %9 : vector<8x1xf32>
    %c0_5 = arith.constant 0 : index
    %c0_6 = arith.constant 0 : index
    %11 = vector.load %arg4[%c0_5, %c0_6] : memref<8x1xf32, #tpu.memory_space<vmem>>, vector<8x1xf32>
    tpu.vector_store %arg4[%c0_5, %c0_6], %10 {strides = array<i32>} : memref<8x1xf32, #tpu.memory_space<vmem>>, vector<8x1xf32>,
    return
  }
  func.func @transform_0(%arg0: i32) -> (i32, i32) {
    %c0_i32 = arith.constant 0 : i32
    %c0_i32_0 = arith.constant 0 : i32
    return %arg0, %c0_i32 : i32, i32
  }
  func.func @transform_1(%arg0: i32) -> (i32, i32) {
    %c0_i32 = arith.constant 0 : i32
    %c0_i32_0 = arith.constant 0 : i32
    %c0_i32_1 = arith.constant 0 : i32
    return %c0_i32, %c0_i32_0 : i32, i32
  }
  func.func @transform_2(%arg0: i32) -> i32 {
    %c0_i32 = arith.constant 0 : i32
    %c0_i32_0 = arith.constant 0 : i32
    return %c0_i32 : i32
  }
  func.func @transform_3(%arg0: i32) -> (i32, i32) {
    %c0_i32 = arith.constant 0 : i32
    %c0_i32_0 = arith.constant 0 : i32
    return %arg0, %c0_i32 : i32, i32
  }
}

</mosaic_0001>

<llo_original>
// kernel: tpu_custom_call.1
$region0: #{tpu_custom_call.1}
  #allocation0 [shape = 'u32[]', space=smem, size = 0x4, offset = 0x4, fixed_abs, tag = 'smem constant byte address 0x4 - core index']
  #allocation1 [shape = 'u32[144,128]{1,0:T(1,128)}', space=vmem, size = 0x12000, scoped, tag = 'internal scratch']
  #allocation2 [shape = 'f32[1]{0:T(128)S(6)}', space=smem, size = 0x200, scoped, tag = 'scoped memory for tpu_custom_call.1']
  %s0 = inlined_call_operand.hbm [shape: f32[8,32], index: 0, kind: input, shape index: {}]
  %s1 = inlined_call_operand.vmem [shape: f32[1,32], index: 1, kind: input, shape index: {}]
  %s2 = inlined_call_operand.<no memory space> [shape: f32[1], index: 2, kind: input, shape index: {}]
  %s3 = inlined_call_operand.vmem [shape: f32[8,1], index: 3, kind: output, shape index: {}]
  %s4 = sld [smem:[#allocation0]]
  $region26: #{tpu_custom_call.1} parent=0
    _
  %s6 = ssub.s32 1, %s4
  %s7 = scalar_select 0, %s6, %s4
  %8 = sst [smem:[#allocation2]] %s2
  $region1: #{tpu_custom_call.1} parent=0
    #allocation3 [shape = 'u8[4096]{0}', space=vmem, size = 0x1000, scoped, tag = 'input window, operand 0, single buffered']
    #allocation4 [shape = 's32[1]{0}', space=sflag, size = 0x4, scoped, tag = 'scoped memory for tpu_custom_call.1']
    %9 = vsyncpa [#allocation4], 0
    // Predicated region
    $region2: #{tpu_custom_call.1} parent=1 // pred_check
      _
    $region3: #{tpu_custom_call.1} parent=1 // pred_check_branch
      %11 = sbr.rel (0) target = $region5
    $region4: #{tpu_custom_call.1} parent=1 // pred_region
      %s13 = ssub.s32 128, 128
      %14 = vsyncadd [#allocation4], %s13
      %s16 = sshll.u32 [#allocation3], 4
      %s17 = int_to_ptr.vmem [resolvable:$true] %s16
      %19 = dma.hbm_to_vmem [thread:$0]  %s0, 128, %s17, [#allocation4]
    $region5: #{tpu_custom_call.1} parent=1 // pred_fallthru
      _
    // Predicated region
    $region6: #{tpu_custom_call.1} parent=1 // pred_check
      _
    $region7: #{tpu_custom_call.1} parent=1 // pred_check_branch
      %21 = sbr.rel (0) target = $region9
    $region8: #{tpu_custom_call.1} parent=1 // pred_region
      _
    $region9: #{tpu_custom_call.1} parent=1 // pred_fallthru
      _
    // Predicated region
    $region10: #{tpu_custom_call.1} parent=1 // pred_check
      _
    $region11: #{tpu_custom_call.1} parent=1 // pred_check_branch
      %23 = sbr.rel (0) target = $region13
    $region12: #{tpu_custom_call.1} parent=1 // pred_region
      _
    $region13: #{tpu_custom_call.1} parent=1 // pred_fallthru
      _
    // Predicated region
    $region14: #{tpu_custom_call.1} parent=1 // pred_check
      _
    $region15: #{tpu_custom_call.1} parent=1 // pred_check_branch
      %25 = sbr.rel (0) target = $region17
    $region16: #{tpu_custom_call.1} parent=1 // pred_region
      %26 = dma.done [#allocation4], 128
    $region17: #{tpu_custom_call.1} parent=1 // pred_fallthru
      _
    %v27 = vld [vmem:[#allocation3] sm:$0xff]
    %v28 = vld [vmem:[%s1] sm:$0x1]
    %v30 = vlaneseq
    %v31 = vshrl.u32 %v30, 7
    %v32 = vsub.s32 0, %v31
    %v33 = vrot.slane %v28, %v32
    %v35 = vmul.f32 %v27, %v33
    %vm36 = vcmask 261120
    %v37 = vsel %vm36, %v35, 0.0
    %38 = vadd.xlane.f32.xlu0 %v37
    %v39 = vpop.xlane.xlu0 %38
    %v40 = vadd.f32 %v39, 0.0
    %s41 = sld [smem:[#allocation2]]
    %v42 = vstv %s41
    %v43 = vadd.f32 %v40, %v42
    %vm44 = vcmask 7168
    %45 = vst.msk [vmem:[%s3] sm:$0xff] %vm44, %v43
    // Predicated region
    $region18: #{tpu_custom_call.1} parent=1 // pred_check
      _
    $region19: #{tpu_custom_call.1} parent=1 // pred_check_branch
      %47 = sbr.rel (0) target = $region21
    $region20: #{tpu_custom_call.1} parent=1 // pred_region
      _
    $region21: #{tpu_custom_call.1} parent=1 // pred_fallthru
      _
    // Predicated region
    $region22: #{tpu_custom_call.1} parent=1 // pred_check
      _
    $region23: #{tpu_custom_call.1} parent=1 // pred_check_branch
      %49 = sbr.rel (0) target = $region25
    $region24: #{tpu_custom_call.1} parent=1 // pred_region
      _
    $region25: #{tpu_custom_call.1} parent=1 // pred_fallthru
      _
    %50 = vsyncpa [#allocation4], 1

</llo_original>
